<compile_context>
chip_gen: v7x
topology: tpu7x:2x2x1
jax: 0.10.0
libtpu: 0.0.40
codegen_flags: <defaults>
</compile_context>

<pallas_src>
import functools

import jax
import jax.numpy as jnp
from jax.experimental import pallas as pl
from jax.experimental.pallas import tpu as pltpu


def _round_up(a: int, b: int) -> int:
    return (a + b - 1) // b * b


def _pick_tp(Pp: int, tp_req: int) -> int:
    """Largest multiple of 128 that divides Pp (Pp % 128 == 0) and <= tp_req."""
    tp_req = max(128, min(tp_req, Pp))
    best = 128
    t = 128
    while t <= tp_req:
        if Pp % t == 0:
            best = t
        t += 128
    return best


def _vmem_budget_bytes() -> int:
    """~0.75 of physical VMEM (v5e/v6e: ~96 MiB, v7x: ~48 MiB), with a safe fallback."""
    try:
        cap = int(pltpu.get_tpu_info().vmem_capacity_bytes)
    except Exception:
        cap = 64 * 1024 * 1024  # conservative (v7x per-TC size)
    return int(0.75 * cap)


def _vmem_estimate(tm: int, tp: int, Hp: int, out_itemsize: int) -> int:
    """Per-step VMEM usage with double-buffered tiles, incl. fc1 intermediate."""
    return (
        2 * tm * Hp * 2                   # x tile (bf16, 2 bufs)
        + 2 * Hp * tp * 2                 # w1 tile (bf16, 2 bufs)
        + 2 * tp * Hp * 2                 # w2 tile (bf16, 2 bufs)
        + 2 * tm * Hp * out_itemsize      # out tile (2 bufs)
        + tm * Hp * 4                     # f32 accumulator scratch
        + tm * tp * (4 + 2)               # fc1 intermediate h (f32 + bf16 copy)
        + 2 * 8 * (tp + Hp) * 4           # biases (sublane-padded, 2 bufs)
        + 2 * 1024 * 1024                 # Mosaic internal scratch margin
    )


def ffn_kernel(x_ref, w1_ref, b1_ref, w2_ref, b2_ref, o_ref, acc_ref):
    k = pl.program_id(1)

    # fc1 partial: [tm, Hp](bf16) @ [Hp, tp](bf16) -> f32, + bias, relu.
    h = jnp.dot(x_ref[...], w1_ref[...], preferred_element_type=jnp.float32)
    h = jnp.maximum(h + b1_ref[...], 0.0)

    # dropout: identity (eval mode)

    # fc2 partial: [tm, tp] @ [tp, Hp] -> f32 contribution for this pf tile.
    contrib = jnp.dot(
        h.astype(w2_ref.dtype), w2_ref[...], preferred_element_type=jnp.float32
    )

    # First pf tile writes the accumulator directly (no zero-init pass).
    @pl.when(k == 0)
    def _():
        acc_ref[...] = contrib

    @pl.when(k > 0)
    def _():
        acc_ref[...] += contrib

    @pl.when(k == pl.num_programs(1) - 1)
    def _():
        o_ref[...] = (acc_ref[...] + b2_ref[...]).astype(o_ref.dtype)


def prepare_ffn_params(w1, b1, w2, b2, compute_dtype=jnp.bfloat16):
    """One-time pad + cast of the FFN weights (hoisted out of the per-call path).

    w1: [H, P]; b1: [P]; w2: [P, H]; b2: [H]  (already transposed vs torch [out,in]).
    Zero padding is exact (relu(0)=0; zero weight rows/cols contribute nothing).
    """
    H, P = w1.shape
    Hp = _round_up(H, 128)
    Pp = _round_up(P, 128)
    return dict(
        w1=jnp.pad(w1, ((0, Hp - H), (0, Pp - P))).astype(compute_dtype),
        b1=jnp.pad(b1, (0, Pp - P)).astype(jnp.float32).reshape(1, Pp),
        w2=jnp.pad(w2, ((0, Pp - P), (0, Hp - H))).astype(compute_dtype),
        b2=jnp.pad(b2, (0, Hp - H)).astype(jnp.float32).reshape(1, Hp),
        hid_dim=H,
        pf_dim=P,
    )


@functools.partial(jax.jit, static_argnames=("tm", "tp", "vmem_limit"))
def _ffn_padded_call(x, w1p, b1p, w2p, b2p, *, tm, tp, vmem_limit):
    B, S, H = x.shape
    Hp, Pp = w1p.shape
    M = B * S
    Mp = _round_up(M, tm)
    compute_dtype = w1p.dtype

    x2 = jnp.pad(x.reshape(M, H), ((0, Mp - M), (0, Hp - H))).astype(compute_dtype)
    grid = (Mp // tm, Pp // tp)

    out2 = pl.pallas_call(
        ffn_kernel,
        out_shape=jax.ShapeDtypeStruct((Mp, Hp), x.dtype),
        grid_spec=pltpu.PrefetchScalarGridSpec(
            num_scalar_prefetch=0,
            grid=grid,
            in_specs=[
                pl.BlockSpec((tm, Hp), lambda i, k: (i, 0)),   # x row tile
                pl.BlockSpec((Hp, tp), lambda i, k: (0, k)),   # fc1 weight column tile
                pl.BlockSpec((1, tp), lambda i, k: (0, k)),    # fc1 bias tile
                pl.BlockSpec((tp, Hp), lambda i, k: (k, 0)),   # fc2 weight row tile
                pl.BlockSpec((1, Hp), lambda i, k: (0, 0)),    # fc2 bias (invariant)
            ],
            out_specs=pl.BlockSpec((tm, Hp), lambda i, k: (i, 0)),
            scratch_shapes=[pltpu.VMEM((tm, Hp), jnp.float32)],
        ),
        compiler_params=pltpu.CompilerParams(
            dimension_semantics=("parallel", "arbitrary"),
            vmem_limit_bytes=int(vmem_limit),
        ),
    )(x2, w1p, b1p, w2p, b2p)

    return out2[:M, :H].reshape(B, S, H)


def positionwise_feedforward(x, params, *, tm=512, tp=512):
    """x: [B, S, H]; params from prepare_ffn_params (padded + bf16 weights)."""
    B, S, H = x.shape
    assert H == params["hid_dim"], "hid_dim mismatch"
    w1p, b1p, w2p, b2p = params["w1"], params["b1"], params["w2"], params["b2"]
    Hp, Pp = w1p.shape
    M = B * S
    out_itemsize = jnp.dtype(x.dtype).itemsize

    # ---- tile selection (pure Python on static shapes) -----------------------
    tm = max(128, tm - tm % 128)
    if tm >= 256:
        tm -= tm % 256                    # match the 256x256 MXU on v6e/v7x
    tm = min(tm, _round_up(M, 128))

    # v7x megacore: keep >= 2 programs on the "parallel" M axis when possible.
    while tm > 128 and _round_up(M, tm) // tm < 2:
        tm = max(128, (tm // 2) // 128 * 128)

    # tp must be a 128-multiple divisor of Pp -> no dead pf columns computed.
    tp = _pick_tp(Pp, tp)

    # ---- generation-aware VMEM budget & shrink-to-fit -------------------------
    budget = _vmem_budget_bytes()
    while _vmem_estimate(tm, tp, Hp, out_itemsize) > budget:
        if tm > 256:
            tm //= 2
        elif tp > 128:
            tp = _pick_tp(Pp, tp // 2)
        elif tm > 128:
            tm = 128
        else:
            break

    est = _vmem_estimate(tm, tp, Hp, out_itemsize)
    vmem_limit = int(min(budget, max(2 * est, 32 * 1024 * 1024)))
    vmem_limit = max(vmem_limit, est)

    return _ffn_padded_call(x, w1p, b1p, w2p, b2p, tm=tm, tp=tp, vmem_limit=vmem_limit)


if __name__ == "__main__":
    # Small shapes implied by the module: hid_dim=32, pf_dim=64, batch=2, seq=8.
    B, S, H, P = 2, 8, 32, 64
    key = jax.random.PRNGKey(0)
    kx, kw1, kb1, kw2, kb2 = jax.random.split(key, 5)

    x = jax.random.normal(kx, (B, S, H), dtype=jnp.float32)
    # torch Linear stores weight as [out, in]; we keep the transposed [in, out].
    w1 = jax.random.normal(kw1, (H, P), dtype=jnp.float32) * 0.1
    b1 = jax.random.normal(kb1, (P,), dtype=jnp.float32) * 0.1
    w2 = jax.random.normal(kw2, (P, H), dtype=jnp.float32) * 0.1
    b2 = jax.random.normal(kb2, (H,), dtype=jnp.float32) * 0.1

    params = prepare_ffn_params(w1, b1, w2, b2)      # hoisted: pad + cast once
    out = positionwise_feedforward(x, params)
    out = jax.block_until_ready(out)

    # Pure-JAX reference using the same bf16 input/weight rounding the kernel
    # applies (dropout = identity in eval mode); accumulation stays f32.
    xb = x.astype(jnp.bfloat16).astype(jnp.float32)
    w1b = w1.astype(jnp.bfloat16).astype(jnp.float32)
    w2b = w2.astype(jnp.bfloat16).astype(jnp.float32)
    h = jnp.maximum(xb @ w1b + b1, 0.0)
    ref = h.astype(jnp.bfloat16).astype(jnp.float32) @ w2b + b2

    assert out.shape == (B, S, H)
    assert jnp.allclose(out, ref, atol=1e-2, rtol=1e-2), "mismatch vs reference"

    print("KERNEL_OK")
</pallas_src>

<mosaic_0001>
module attributes {stable_mosaic.version = 11 : i64} {
  func.func @ffn_kernel(%arg0: i32, %arg1: i32, %arg2: memref<128x128xbf16, #tpu.memory_space<vmem>>, %arg3: memref<128x128xbf16, #tpu.memory_space<vmem>>, %arg4: memref<1x128xf32, #tpu.memory_space<vmem>>, %arg5: memref<128x128xbf16, #tpu.memory_space<vmem>>, %arg6: memref<1x128xf32, #tpu.memory_space<vmem>>, %arg7: memref<128x128xf32, #tpu.memory_space<vmem>>, %arg8: memref<128x128xf32, #tpu.memory_space<vmem>>) attributes {dimension_semantics = [#tpu.dimension_semantics<parallel>, #tpu.dimension_semantics<arbitrary>], iteration_bounds = array<i64: 1, 1>, scalar_prefetch = 0 : i64, scratch_operands = 1 : i64, tpu.core_type = #tpu.core_type<tc>, window_params = [{transform_indices = @transform_0, window_bounds = array<i64: 128, 128>}, {transform_indices = @transform_1, window_bounds = array<i64: 128, 128>}, {transform_indices = @transform_2, window_bounds = array<i64: 1, 128>}, {transform_indices = @transform_3, window_bounds = array<i64: 128, 128>}, {pipeline_mode = #tpu.pipeline_mode<synchronous>, transform_indices = @transform_4, window_bounds = array<i64: 1, 128>}, {transform_indices = @transform_5, window_bounds = array<i64: 128, 128>}]} {
    %c0 = arith.constant 0 : index
    %c0_0 = arith.constant 0 : index
    %0 = vector.load %arg2[%c0, %c0_0] : memref<128x128xbf16, #tpu.memory_space<vmem>>, vector<128x128xbf16>
    %c0_1 = arith.constant 0 : index
    %c0_2 = arith.constant 0 : index
    %1 = vector.load %arg3[%c0_1, %c0_2] : memref<128x128xbf16, #tpu.memory_space<vmem>>, vector<128x128xbf16>
    %cst = arith.constant dense<0.000000e+00> : vector<128x128xf32>
    %2 = tpu.matmul %0, %1, %cst {dimension_numbers = #tpu.dot_dimension_numbers<[1], [0], [0], [1], [0, 0, 1, 1], [], []>} : vector<128x128xbf16>, vector<128x128xbf16>, vector<128x128xf32> -> vector<128x128xf32>
    %c0_3 = arith.constant 0 : index
    %c0_4 = arith.constant 0 : index
    %3 = vector.load %arg4[%c0_3, %c0_4] : memref<1x128xf32, #tpu.memory_space<vmem>>, vector<1x128xf32>
    %4 = vector.broadcast %3 : vector<1x128xf32> to vector<128x128xf32>
    %5 = arith.addf %2, %4 : vector<128x128xf32>
    %cst_5 = arith.constant 0.000000e+00 : f32
    %6 = vector.broadcast %cst_5 : f32 to vector<128x128xf32>
    %7 = arith.maximumf %5, %6 : vector<128x128xf32>
    %8 = arith.truncf %7 : vector<128x128xf32> to vector<128x128xbf16>
    %c0_6 = arith.constant 0 : index
    %c0_7 = arith.constant 0 : index
    %9 = vector.load %arg5[%c0_6, %c0_7] : memref<128x128xbf16, #tpu.memory_space<vmem>>, vector<128x128xbf16>
    %cst_8 = arith.constant dense<0.000000e+00> : vector<128x128xf32>
    %10 = tpu.matmul %8, %9, %cst_8 {dimension_numbers = #tpu.dot_dimension_numbers<[1], [0], [0], [1], [0, 0, 1, 1], [], []>} : vector<128x128xbf16>, vector<128x128xbf16>, vector<128x128xf32> -> vector<128x128xf32>
    %c0_i32 = arith.constant 0 : i32
    %11 = arith.cmpi eq, %arg1, %c0_i32 : i32
    %12 = arith.extui %11 : i1 to i32
    %c0_i32_9 = arith.constant 0 : i32
    %13 = arith.cmpi ne, %12, %c0_i32_9 : i32
    scf.if %13 {
      %c0_14 = arith.constant 0 : index
      %c0_15 = arith.constant 0 : index
      %20 = vector.load %arg8[%c0_14, %c0_15] : memref<128x128xf32, #tpu.memory_space<vmem>>, vector<128x128xf32>
      tpu.vector_store %arg8[%c0_14, %c0_15], %10 {strides = array<i32>} : memref<128x128xf32, #tpu.memory_space<vmem>>, vector<128x128xf32>,
    } else {
    }
    %c0_i32_10 = arith.constant 0 : i32
    %14 = arith.cmpi sgt, %arg1, %c0_i32_10 : i32
    %15 = arith.extui %14 : i1 to i32
    %c0_i32_11 = arith.constant 0 : i32
    %16 = arith.cmpi ne, %15, %c0_i32_11 : i32
    scf.if %16 {
      %c0_14 = arith.constant 0 : index
      %c0_15 = arith.constant 0 : index
      %20 = vector.load %arg8[%c0_14, %c0_15] : memref<128x128xf32, #tpu.memory_space<vmem>>, vector<128x128xf32>
      %21 = arith.addf %20, %10 : vector<128x128xf32>
      %c0_16 = arith.constant 0 : index
      %c0_17 = arith.constant 0 : index
      %22 = vector.load %arg8[%c0_16, %c0_17] : memref<128x128xf32, #tpu.memory_space<vmem>>, vector<128x128xf32>
      tpu.vector_store %arg8[%c0_16, %c0_17], %21 {strides = array<i32>} : memref<128x128xf32, #tpu.memory_space<vmem>>, vector<128x128xf32>,
    } else {
    }
    %c0_i32_12 = arith.constant 0 : i32
    %17 = arith.cmpi eq, %arg1, %c0_i32_12 : i32
    %18 = arith.extui %17 : i1 to i32
    %c0_i32_13 = arith.constant 0 : i32
    %19 = arith.cmpi ne, %18, %c0_i32_13 : i32
    scf.if %19 {
      %c0_14 = arith.constant 0 : index
      %c0_15 = arith.constant 0 : index
      %20 = vector.load %arg8[%c0_14, %c0_15] : memref<128x128xf32, #tpu.memory_space<vmem>>, vector<128x128xf32>
      %c0_16 = arith.constant 0 : index
      %c0_17 = arith.constant 0 : index
      %21 = vector.load %arg6[%c0_16, %c0_17] : memref<1x128xf32, #tpu.memory_space<vmem>>, vector<1x128xf32>
      %22 = vector.broadcast %21 : vector<1x128xf32> to vector<128x128xf32>
      %23 = arith.addf %20, %22 : vector<128x128xf32>
      %c0_18 = arith.constant 0 : index
      %c0_19 = arith.constant 0 : index
      %24 = vector.load %arg7[%c0_18, %c0_19] : memref<128x128xf32, #tpu.memory_space<vmem>>, vector<128x128xf32>
      tpu.vector_store %arg7[%c0_18, %c0_19], %23 {strides = array<i32>} : memref<128x128xf32, #tpu.memory_space<vmem>>, vector<128x128xf32>,
    } else {
    }
    return
  }
  func.func @transform_0(%arg0: i32, %arg1: i32) -> (i32, i32) {
    %c0_i32 = arith.constant 0 : i32
    %c0_i32_0 = arith.constant 0 : i32
    return %arg0, %c0_i32 : i32, i32
  }
  func.func @transform_1(%arg0: i32, %arg1: i32) -> (i32, i32) {
    %c0_i32 = arith.constant 0 : i32
    %c0_i32_0 = arith.constant 0 : i32
    return %c0_i32, %arg1 : i32, i32
  }
  func.func @transform_2(%arg0: i32, %arg1: i32) -> (i32, i32) {
    %c0_i32 = arith.constant 0 : i32
    %c0_i32_0 = arith.constant 0 : i32
    return %c0_i32, %arg1 : i32, i32
  }
  func.func @transform_3(%arg0: i32, %arg1: i32) -> (i32, i32) {
    %c0_i32 = arith.constant 0 : i32
    %c0_i32_0 = arith.constant 0 : i32
    return %arg1, %c0_i32 : i32, i32
  }
  func.func @transform_4(%arg0: i32, %arg1: i32) -> (i32, i32) {
    %c0_i32 = arith.constant 0 : i32
    %c0_i32_0 = arith.constant 0 : i32
    %c0_i32_1 = arith.constant 0 : i32
    return %c0_i32, %c0_i32_0 : i32, i32
  }
  func.func @transform_5(%arg0: i32, %arg1: i32) -> (i32, i32) {
    %c0_i32 = arith.constant 0 : i32
    %c0_i32_0 = arith.constant 0 : i32
    return %arg0, %c0_i32 : i32, i32
  }
}

</mosaic_0001>

<llo_original>
// kernel: _ffn_padded_call.1
$region0: #{_ffn_padded_call.1}
  #allocation0 [shape = 'u32[]', space=smem, size = 0x4, offset = 0x4, fixed_abs, tag = 'smem constant byte address 0x4 - core index']
  #allocation1 [shape = 'u32[144,128]{1,0:T(1,128)}', space=vmem, size = 0x12000, scoped, tag = 'internal scratch']
  #allocation2 [shape = 'f32[128,128]{1,0:T(8,128)}', space=vmem, size = 0x10000, scoped, tag = 'scratch operand']
  %s0 = inlined_call_operand.vmem [shape: bf16[128,128], index: 0, kind: input, shape index: {}]
  %s1 = inlined_call_operand.vmem [shape: bf16[128,128], index: 1, kind: input, shape index: {}]
  %s2 = inlined_call_operand.vmem [shape: f32[1,128], index: 2, kind: input, shape index: {}]
  %s3 = inlined_call_operand.hbm [shape: bf16[128,128], index: 3, kind: input, shape index: {}]
  %s4 = inlined_call_operand.vmem [shape: f32[1,128], index: 4, kind: input, shape index: {}]
  %s5 = inlined_call_operand.vmem [shape: f32[128,128], index: 5, kind: output, shape index: {}]
  %s6 = sld [smem:[#allocation0]]
  $region46: #{_ffn_padded_call.1} parent=0
    _
  %s8 = ssub.s32 1, %s6
  %s9 = scalar_select 0, %s8, %s6
  $region1: #{_ffn_padded_call.1} parent=0
    #allocation3 [shape = 'u8[32768]{0}', space=vmem, size = 0x8000, scoped, tag = 'input window, operand 3, single buffered']
    #allocation4 [shape = 's32[1]{0}', space=sflag, size = 0x4, scoped, tag = 'scoped memory for _ffn_padded_call.1']
    %10 = vsyncpa [#allocation4], 0
    // Predicated region
    $region2: #{_ffn_padded_call.1} parent=1 // pred_check
      _
    $region3: #{_ffn_padded_call.1} parent=1 // pred_check_branch
      %12 = sbr.rel (0) target = $region5
    $region4: #{_ffn_padded_call.1} parent=1 // pred_region
      _
    $region5: #{_ffn_padded_call.1} parent=1 // pred_fallthru
      _
    // Predicated region
    $region6: #{_ffn_padded_call.1} parent=1 // pred_check
      _
    $region7: #{_ffn_padded_call.1} parent=1 // pred_check_branch
      %14 = sbr.rel (0) target = $region9
    $region8: #{_ffn_padded_call.1} parent=1 // pred_region
      _
    $region9: #{_ffn_padded_call.1} parent=1 // pred_fallthru
      _
    // Predicated region
    $region10: #{_ffn_padded_call.1} parent=1 // pred_check
      _
    $region11: #{_ffn_padded_call.1} parent=1 // pred_check_branch
      %16 = sbr.rel (0) target = $region13
    $region12: #{_ffn_padded_call.1} parent=1 // pred_region
      _
    $region13: #{_ffn_padded_call.1} parent=1 // pred_fallthru
      _
    // Predicated region
    $region14: #{_ffn_padded_call.1} parent=1 // pred_check
      _
    $region15: #{_ffn_padded_call.1} parent=1 // pred_check_branch
      %18 = sbr.rel (0) target = $region17
    $region16: #{_ffn_padded_call.1} parent=1 // pred_region
      %s20 = ssub.s32 1024, 1024
      %21 = vsyncadd [#allocation4], %s20
      %s22 = sshll.u32 [#allocation3], 4
      %s23 = int_to_ptr.vmem [resolvable:$true] %s22
      %28 = dma.hbm_to_vmem [thread:$0]  %s3, 1024, %s23, [#allocation4], 64, 64, 4
    $region17: #{_ffn_padded_call.1} parent=1 // pred_fallthru
      _
    // Predicated region
    $region18: #{_ffn_padded_call.1} parent=1 // pred_check
      _
    $region19: #{_ffn_padded_call.1} parent=1 // pred_check_branch
      %30 = sbr.rel (0) target = $region21
    $region20: #{_ffn_padded_call.1} parent=1 // pred_region
      _
    $region21: #{_ffn_padded_call.1} parent=1 // pred_fallthru
      _
    // Predicated region
    $region22: #{_ffn_padded_call.1} parent=1 // pred_check
      _
    $region23: #{_ffn_padded_call.1} parent=1 // pred_check_branch
      %32 = sbr.rel (0) target = $region25
    $region24: #{_ffn_padded_call.1} parent=1 // pred_region
      %33 = dma.done [#allocation4], 1024
    $region25: #{_ffn_padded_call.1} parent=1 // pred_fallthru
      _
    %v35 = vld [vmem:[%s0] sm:$0xf]
    %v36 = vld [vmem:[%s0 + $0x4] sm:$0xf]
    %v37 = vld [vmem:[%s0 + $0x8] sm:$0xf]
    %v38 = vld [vmem:[%s0 + $0xc] sm:$0xf]
    %v39 = vld [vmem:[%s0 + $0x10] sm:$0xf]
    %v40 = vld [vmem:[%s0 + $0x14] sm:$0xf]
    %v41 = vld [vmem:[%s0 + $0x18] sm:$0xf]
    %v42 = vld [vmem:[%s0 + $0x1c] sm:$0xf]
    %v43 = vld [vmem:[%s0 + $0x20] sm:$0xf]
    %v44 = vld [vmem:[%s0 + $0x24] sm:$0xf]
    %v45 = vld [vmem:[%s0 + $0x28] sm:$0xf]
    %v46 = vld [vmem:[%s0 + $0x2c] sm:$0xf]
    %v47 = vld [vmem:[%s0 + $0x30] sm:$0xf]
    %v48 = vld [vmem:[%s0 + $0x34] sm:$0xf]
    %v49 = vld [vmem:[%s0 + $0x38] sm:$0xf]
    %v50 = vld [vmem:[%s0 + $0x3c] sm:$0xf]
    %v51 = vld [vmem:[%s1] sm:$0xf]
    %v52 = vld [vmem:[%s1 + $0x4] sm:$0xf]
    %v53 = vld [vmem:[%s1 + $0x8] sm:$0xf]
    %v54 = vld [vmem:[%s1 + $0xc] sm:$0xf]
    %v55 = vld [vmem:[%s1 + $0x10] sm:$0xf]
    %v56 = vld [vmem:[%s1 + $0x14] sm:$0xf]
    %v57 = vld [vmem:[%s1 + $0x18] sm:$0xf]
    %v58 = vld [vmem:[%s1 + $0x1c] sm:$0xf]
    %v59 = vld [vmem:[%s1 + $0x20] sm:$0xf]
    %v60 = vld [vmem:[%s1 + $0x24] sm:$0xf]
    %v61 = vld [vmem:[%s1 + $0x28] sm:$0xf]
    %v62 = vld [vmem:[%s1 + $0x2c] sm:$0xf]
    %v63 = vld [vmem:[%s1 + $0x30] sm:$0xf]
    %v64 = vld [vmem:[%s1 + $0x34] sm:$0xf]
    %v65 = vld [vmem:[%s1 + $0x38] sm:$0xf]
    %v66 = vld [vmem:[%s1 + $0x3c] sm:$0xf]
    %v67 = vld [vmem:[%s2] sm:$0x1]
    %v69 = vlaneseq
    %v70 = vshrl.u32 %v69, 7
    %v71 = vsub.s32 0, %v70
    %v72 = vrot.slane %v67, %v71
    %v90 = vunpack.c.l.b16 %v35
    %v91 = vunpack.c.l.b16 %v36
    %v92 = vunpack.c.l.b16 %v37
    %v93 = vunpack.c.l.b16 %v38
    %v94 = vunpack.c.l.b16 %v39
    %v95 = vunpack.c.l.b16 %v40
    %v96 = vunpack.c.l.b16 %v41
    %v97 = vunpack.c.l.b16 %v42
    %v98 = vunpack.c.l.b16 %v43
    %v99 = vunpack.c.l.b16 %v44
    %v100 = vunpack.c.l.b16 %v45
    %v101 = vunpack.c.l.b16 %v46
    %v102 = vunpack.c.l.b16 %v47
    %v103 = vunpack.c.l.b16 %v48
    %v104 = vunpack.c.l.b16 %v49
    %v105 = vunpack.c.l.b16 %v50
    %v106 = vpack.c.b16 %v91, %v90
    %v107 = vpack.c.b16 %v93, %v92
    %v108 = vpack.c.b16 %v95, %v94
    %v109 = vpack.c.b16 %v97, %v96
    %v110 = vpack.c.b16 %v99, %v98
    %v111 = vpack.c.b16 %v101, %v100
    %v112 = vpack.c.b16 %v103, %v102
    %v113 = vpack.c.b16 %v105, %v104
    %v138 = vunpack.c.l.b16 %v51
    %v139 = vunpack.c.l.b16 %v52
    %v140 = vunpack.c.l.b16 %v53
    %v141 = vunpack.c.l.b16 %v54
    %v142 = vunpack.c.l.b16 %v55
    %v143 = vunpack.c.l.b16 %v56
    %v144 = vunpack.c.l.b16 %v57
    %v145 = vunpack.c.l.b16 %v58
    %v146 = vunpack.c.l.b16 %v59
    %v147 = vunpack.c.l.b16 %v60
    %v148 = vunpack.c.l.b16 %v61
    %v149 = vunpack.c.l.b16 %v62
    %v150 = vunpack.c.l.b16 %v63
    %v151 = vunpack.c.l.b16 %v64
    %v152 = vunpack.c.l.b16 %v65
    %v153 = vunpack.c.l.b16 %v66
    %v154 = vpack.c.b16 %v139, %v138
    %v155 = vpack.c.b16 %v141, %v140
    %v156 = vpack.c.b16 %v143, %v142
    %v157 = vpack.c.b16 %v145, %v144
    %v158 = vpack.c.b16 %v147, %v146
    %v159 = vpack.c.b16 %v149, %v148
    %v160 = vpack.c.b16 %v151, %v150
    %v161 = vpack.c.b16 %v153, %v152
    %170 = vmatprep.subr.bf16.mxu0 0
    %171 = vmatpush1.bf16.msra.mxu0 %v154
    %172 = vmatprep.subr.bf16.mxu0 0
    %173 = vmatpush1.bf16.msra.mxu0 %v155
    %174 = vmatprep.subr.bf16.mxu0 0
    %175 = vmatpush1.bf16.msra.mxu0 %v156
    %176 = vmatprep.subr.bf16.mxu0 0
    %177 = vmatpush1.bf16.msra.mxu0 %v157
    %178 = vmatprep.subr.bf16.mxu0 0
    %179 = vmatpush1.bf16.msra.mxu0 %v158
    %180 = vmatprep.subr.bf16.mxu0 0
    %181 = vmatpush1.bf16.msra.mxu0 %v159
    %182 = vmatprep.subr.bf16.mxu0 0
    %183 = vmatpush1.bf16.msra.mxu0 %v160
    %184 = vmatprep.subr.bf16.mxu0 0
    %185 = vmatpush1.bf16.msra.mxu0 %v161
    %186 = vmatprep.subr.bf16.mxu0 0
    %187 = vmatpush1.bf16.msra.mxu0 0
    %188 = vmatprep.subr.bf16.mxu0 0
    %189 = vmatpush1.bf16.msra.mxu0 0
    %190 = vmatprep.subr.bf16.mxu0 0
    %191 = vmatpush1.bf16.msra.mxu0 0
    %192 = vmatprep.subr.bf16.mxu0 0
    %193 = vmatpush1.bf16.msra.mxu0 0
    %194 = vmatprep.subr.bf16.mxu0 0
    %195 = vmatpush1.bf16.msra.mxu0 0
    %196 = vmatprep.subr.bf16.mxu0 0
    %197 = vmatpush1.bf16.msra.mxu0 0
    %198 = vmatprep.subr.bf16.mxu0 0
    %199 = vmatpush1.bf16.msra.mxu0 0
    %200 = vmatprep.subr.bf16.mxu0 0
    %201 = vmatpush1.bf16.msra.mxu0 0
    %202 = vmatprep.mubr.bf16.mxu0 0
    %203 = vmatmul.mubr.bf16.gmra.mrb[0].mxu0 %v106
    %v204 = vpop.f32.mrb[0].mxu0
    %v205 = vadd.f32 %v72, %v204
    %v206 = vpop.f32.mrb[0].mxu0
    %v207 = vpop.f32.mrb[0].mxu0
    %v208 = vadd.f32 %v72, %v207
    %v209 = vpop.f32.mrb[0].mxu0
    %210 = vmatprep.mubr.bf16.mxu0 0
    %211 = vmatmul.mubr.bf16.gmra.mrb[0].mxu0 %v107
    %v212 = vpop.f32.mrb[0].mxu0
    %v213 = vadd.f32 %v72, %v212
    %v214 = vpop.f32.mrb[0].mxu0
    %v215 = vpop.f32.mrb[0].mxu0
    %v216 = vadd.f32 %v72, %v215
    %v217 = vpop.f32.mrb[0].mxu0
    %218 = vmatprep.mubr.bf16.mxu0 0
    %219 = vmatmul.mubr.bf16.gmra.mrb[0].mxu0 %v108
    %v220 = vpop.f32.mrb[0].mxu0
    %v221 = vadd.f32 %v72, %v220
    %v222 = vpop.f32.mrb[0].mxu0
    %v223 = vpop.f32.mrb[0].mxu0
    %v224 = vadd.f32 %v72, %v223
    %v225 = vpop.f32.mrb[0].mxu0
    %226 = vmatprep.mubr.bf16.mxu0 0
    %227 = vmatmul.mubr.bf16.gmra.mrb[0].mxu0 %v109
    %v228 = vpop.f32.mrb[0].mxu0
    %v229 = vadd.f32 %v72, %v228
    %v230 = vpop.f32.mrb[0].mxu0
    %v231 = vpop.f32.mrb[0].mxu0
    %v232 = vadd.f32 %v72, %v231
    %v233 = vpop.f32.mrb[0].mxu0
    %234 = vmatprep.mubr.bf16.mxu0 0
    %235 = vmatmul.mubr.bf16.gmra.mrb[0].mxu0 %v110
    %v236 = vpop.f32.mrb[0].mxu0
    %v237 = vadd.f32 %v72, %v236
    %v238 = vpop.f32.mrb[0].mxu0
    %v239 = vpop.f32.mrb[0].mxu0
    %v240 = vadd.f32 %v72, %v239
    %v241 = vpop.f32.mrb[0].mxu0
    %242 = vmatprep.mubr.bf16.mxu0 0
    %243 = vmatmul.mubr.bf16.gmra.mrb[0].mxu0 %v111
    %v244 = vpop.f32.mrb[0].mxu0
    %v245 = vadd.f32 %v72, %v244
    %v246 = vpop.f32.mrb[0].mxu0
    %v247 = vpop.f32.mrb[0].mxu0
    %v248 = vadd.f32 %v72, %v247
    %v249 = vpop.f32.mrb[0].mxu0
    %250 = vmatprep.mubr.bf16.mxu0 0
    %251 = vmatmul.mubr.bf16.gmra.mrb[0].mxu0 %v112
    %v252 = vpop.f32.mrb[0].mxu0
    %v253 = vadd.f32 %v72, %v252
    %v254 = vpop.f32.mrb[0].mxu0
    %v255 = vpop.f32.mrb[0].mxu0
    %v256 = vadd.f32 %v72, %v255
    %v257 = vpop.f32.mrb[0].mxu0
    %258 = vmatprep.mubr.bf16.mxu0 0
    %259 = vmatmul.mubr.bf16.gmra.mrb[0].mxu0 %v113
    %v260 = vpop.f32.mrb[0].mxu0
    %v261 = vadd.f32 %v72, %v260
    %v262 = vpop.f32.mrb[0].mxu0
    %v263 = vpop.f32.mrb[0].mxu0
    %v264 = vadd.f32 %v72, %v263
    %v265 = vpop.f32.mrb[0].mxu0
    %266 = vdwg.mxu0
    %v267 = vmax.f32 %v205, 0.0
    %v268 = vmax.f32 %v208, 0.0
    %v269 = vmax.f32 %v213, 0.0
    %v270 = vmax.f32 %v216, 0.0
    %v271 = vmax.f32 %v221, 0.0
    %v272 = vmax.f32 %v224, 0.0
    %v273 = vmax.f32 %v229, 0.0
    %v274 = vmax.f32 %v232, 0.0
    %v275 = vmax.f32 %v237, 0.0
    %v276 = vmax.f32 %v240, 0.0
    %v277 = vmax.f32 %v245, 0.0
    %v278 = vmax.f32 %v248, 0.0
    %v279 = vmax.f32 %v253, 0.0
    %v280 = vmax.f32 %v256, 0.0
    %v281 = vmax.f32 %v261, 0.0
    %v282 = vmax.f32 %v264, 0.0
    %v283 = vpack.c.bf16 %v268, %v267
    %v284 = vpack.c.bf16 %v270, %v269
    %v285 = vpack.c.bf16 %v272, %v271
    %v286 = vpack.c.bf16 %v274, %v273
    %v287 = vpack.c.bf16 %v276, %v275
    %v288 = vpack.c.bf16 %v278, %v277
    %v289 = vpack.c.bf16 %v280, %v279
    %v290 = vpack.c.bf16 %v282, %v281
    %v291 = vld [vmem:[#allocation3] sm:$0xf]
    %v292 = vld [vmem:[#allocation3 + $0x4] sm:$0xf]
    %v293 = vld [vmem:[#allocation3 + $0x8] sm:$0xf]
    %v294 = vld [vmem:[#allocation3 + $0xc] sm:$0xf]
    %v295 = vld [vmem:[#allocation3 + $0x10] sm:$0xf]
    %v296 = vld [vmem:[#allocation3 + $0x14] sm:$0xf]
    %v297 = vld [vmem:[#allocation3 + $0x18] sm:$0xf]
    %v298 = vld [vmem:[#allocation3 + $0x1c] sm:$0xf]
    %v299 = vld [vmem:[#allocation3 + $0x20] sm:$0xf]
    %v300 = vld [vmem:[#allocation3 + $0x24] sm:$0xf]
    %v301 = vld [vmem:[#allocation3 + $0x28] sm:$0xf]
    %v302 = vld [vmem:[#allocation3 + $0x2c] sm:$0xf]
    %v303 = vld [vmem:[#allocation3 + $0x30] sm:$0xf]
    %v304 = vld [vmem:[#allocation3 + $0x34] sm:$0xf]
    %v305 = vld [vmem:[#allocation3 + $0x38] sm:$0xf]
    %v306 = vld [vmem:[#allocation3 + $0x3c] sm:$0xf]
    %v323 = vunpack.c.l.b16 %v291
    %v324 = vunpack.c.l.b16 %v292
    %v325 = vunpack.c.l.b16 %v293
    %v326 = vunpack.c.l.b16 %v294
    %v327 = vunpack.c.l.b16 %v295
    %v328 = vunpack.c.l.b16 %v296
    %v329 = vunpack.c.l.b16 %v297
    %v330 = vunpack.c.l.b16 %v298
    %v331 = vunpack.c.l.b16 %v299
    %v332 = vunpack.c.l.b16 %v300
    %v333 = vunpack.c.l.b16 %v301
    %v334 = vunpack.c.l.b16 %v302
    %v335 = vunpack.c.l.b16 %v303
    %v336 = vunpack.c.l.b16 %v304
    %v337 = vunpack.c.l.b16 %v305
    %v338 = vunpack.c.l.b16 %v306
    %v339 = vpack.c.b16 %v324, %v323
    %v340 = vpack.c.b16 %v326, %v325
    %v341 = vpack.c.b16 %v328, %v327
    %v342 = vpack.c.b16 %v330, %v329
    %v343 = vpack.c.b16 %v332, %v331
    %v344 = vpack.c.b16 %v334, %v333
    %v345 = vpack.c.b16 %v336, %v335
    %v346 = vpack.c.b16 %v338, %v337
    %355 = vmatprep.subr.bf16.mxu0 0
    %356 = vmatpush1.bf16.msra.mxu0 %v339
    %357 = vmatprep.subr.bf16.mxu0 0
    %358 = vmatpush1.bf16.msra.mxu0 %v340
    %359 = vmatprep.subr.bf16.mxu0 0
    %360 = vmatpush1.bf16.msra.mxu0 %v341
    %361 = vmatprep.subr.bf16.mxu0 0
    %362 = vmatpush1.bf16.msra.mxu0 %v342
    %363 = vmatprep.subr.bf16.mxu0 0
    %364 = vmatpush1.bf16.msra.mxu0 %v343
    %365 = vmatprep.subr.bf16.mxu0 0
    %366 = vmatpush1.bf16.msra.mxu0 %v344
    %367 = vmatprep.subr.bf16.mxu0 0
    %368 = vmatpush1.bf16.msra.mxu0 %v345
    %369 = vmatprep.subr.bf16.mxu0 0
    %370 = vmatpush1.bf16.msra.mxu0 %v346
    %371 = vmatprep.subr.bf16.mxu0 0
    %372 = vmatpush1.bf16.msra.mxu0 0
    %373 = vmatprep.subr.bf16.mxu0 0
    %374 = vmatpush1.bf16.msra.mxu0 0
    %375 = vmatprep.subr.bf16.mxu0 0
    %376 = vmatpush1.bf16.msra.mxu0 0
    %377 = vmatprep.subr.bf16.mxu0 0
    %378 = vmatpush1.bf16.msra.mxu0 0
    %379 = vmatprep.subr.bf16.mxu0 0
    %380 = vmatpush1.bf16.msra.mxu0 0
    %381 = vmatprep.subr.bf16.mxu0 0
    %382 = vmatpush1.bf16.msra.mxu0 0
    %383 = vmatprep.subr.bf16.mxu0 0
    %384 = vmatpush1.bf16.msra.mxu0 0
    %385 = vmatprep.subr.bf16.mxu0 0
    %386 = vmatpush1.bf16.msra.mxu0 0
    %387 = vmatprep.mubr.bf16.mxu0 0
    %388 = vmatmul.mubr.bf16.gmra.mrb[0].mxu0 %v283
    %v389 = vpop.f32.mrb[0].mxu0
    %v390 = vadd.f32 0.0, %v389
    %v391 = vpop.f32.mrb[0].mxu0
    %v392 = vpop.f32.mrb[0].mxu0
    %v393 = vadd.f32 0.0, %v392
    %v394 = vpop.f32.mrb[0].mxu0
    %395 = vmatprep.mubr.bf16.mxu0 0
    %396 = vmatmul.mubr.bf16.gmra.mrb[0].mxu0 %v284
    %v397 = vpop.f32.mrb[0].mxu0
    %v398 = vadd.f32 0.0, %v397
    %v399 = vpop.f32.mrb[0].mxu0
    %v400 = vpop.f32.mrb[0].mxu0
    %v401 = vadd.f32 0.0, %v400
    %v402 = vpop.f32.mrb[0].mxu0
    %403 = vmatprep.mubr.bf16.mxu0 0
    %404 = vmatmul.mubr.bf16.gmra.mrb[0].mxu0 %v285
    %v405 = vpop.f32.mrb[0].mxu0
    %v406 = vadd.f32 0.0, %v405
    %v407 = vpop.f32.mrb[0].mxu0
    %v408 = vpop.f32.mrb[0].mxu0
    %v409 = vadd.f32 0.0, %v408
    %v410 = vpop.f32.mrb[0].mxu0
    %411 = vmatprep.mubr.bf16.mxu0 0
    %412 = vmatmul.mubr.bf16.gmra.mrb[0].mxu0 %v286
    %v413 = vpop.f32.mrb[0].mxu0
    %v414 = vadd.f32 0.0, %v413
    %v415 = vpop.f32.mrb[0].mxu0
    %v416 = vpop.f32.mrb[0].mxu0
    %v417 = vadd.f32 0.0, %v416
    %v418 = vpop.f32.mrb[0].mxu0
    %419 = vmatprep.mubr.bf16.mxu0 0
    %420 = vmatmul.mubr.bf16.gmra.mrb[0].mxu0 %v287
    %v421 = vpop.f32.mrb[0].mxu0
    %v422 = vadd.f32 0.0, %v421
    %v423 = vpop.f32.mrb[0].mxu0
    %v424 = vpop.f32.mrb[0].mxu0
    %v425 = vadd.f32 0.0, %v424
    %v426 = vpop.f32.mrb[0].mxu0
    %427 = vmatprep.mubr.bf16.mxu0 0
    %428 = vmatmul.mubr.bf16.gmra.mrb[0].mxu0 %v288
    %v429 = vpop.f32.mrb[0].mxu0
    %v430 = vadd.f32 0.0, %v429
    %v431 = vpop.f32.mrb[0].mxu0
    %v432 = vpop.f32.mrb[0].mxu0
    %v433 = vadd.f32 0.0, %v432
    %v434 = vpop.f32.mrb[0].mxu0
    %435 = vmatprep.mubr.bf16.mxu0 0
    %436 = vmatmul.mubr.bf16.gmra.mrb[0].mxu0 %v289
    %v437 = vpop.f32.mrb[0].mxu0
    %v438 = vadd.f32 0.0, %v437
    %v439 = vpop.f32.mrb[0].mxu0
    %v440 = vpop.f32.mrb[0].mxu0
    %v441 = vadd.f32 0.0, %v440
    %v442 = vpop.f32.mrb[0].mxu0
    %443 = vmatprep.mubr.bf16.mxu0 0
    %444 = vmatmul.mubr.bf16.gmra.mrb[0].mxu0 %v290
    %v445 = vpop.f32.mrb[0].mxu0
    %v446 = vadd.f32 0.0, %v445
    %v447 = vpop.f32.mrb[0].mxu0
    %v448 = vpop.f32.mrb[0].mxu0
    %v449 = vadd.f32 0.0, %v448
    %v450 = vpop.f32.mrb[0].mxu0
    %451 = vdwg.mxu0
    %p452 = scmp.eq.s32.totalorder 0, 0
    // Predicated region
    $region26: #{_ffn_padded_call.1} parent=1 // pred_check
      %p453 = pneg %p452
    $region27: #{_ffn_padded_call.1} parent=1 // pred_check_branch
      %455 = sbr.rel (%p453) target = $region29
    $region28: #{_ffn_padded_call.1} parent=1 // pred_region
      %456 = vst [vmem:[#allocation2] sm:$0xff] %v390
      %457 = vst [vmem:[#allocation2 + $0x8] sm:$0xff] %v393
      %458 = vst [vmem:[#allocation2 + $0x10] sm:$0xff] %v398
      %459 = vst [vmem:[#allocation2 + $0x18] sm:$0xff] %v401
      %460 = vst [vmem:[#allocation2 + $0x20] sm:$0xff] %v406
      %461 = vst [vmem:[#allocation2 + $0x28] sm:$0xff] %v409
      %462 = vst [vmem:[#allocation2 + $0x30] sm:$0xff] %v414
      %463 = vst [vmem:[#allocation2 + $0x38] sm:$0xff] %v417
      %464 = vst [vmem:[#allocation2 + $0x40] sm:$0xff] %v422
      %465 = vst [vmem:[#allocation2 + $0x48] sm:$0xff] %v425
      %466 = vst [vmem:[#allocation2 + $0x50] sm:$0xff] %v430
      %467 = vst [vmem:[#allocation2 + $0x58] sm:$0xff] %v433
      %468 = vst [vmem:[#allocation2 + $0x60] sm:$0xff] %v438
      %469 = vst [vmem:[#allocation2 + $0x68] sm:$0xff] %v441
      %470 = vst [vmem:[#allocation2 + $0x70] sm:$0xff] %v446
      %471 = vst [vmem:[#allocation2 + $0x78] sm:$0xff] %v449
    $region29: #{_ffn_padded_call.1} parent=1 // pred_fallthru
      _
    %p472 = scmp.gt.s32.totalorder 0, 0
    // Predicated region
    $region30: #{_ffn_padded_call.1} parent=1 // pred_check
      %p473 = pneg %p472
    $region31: #{_ffn_padded_call.1} parent=1 // pred_check_branch
      %475 = sbr.rel (%p473) target = $region33
    $region32: #{_ffn_padded_call.1} parent=1 // pred_region
      %v476 = vld [vmem:[#allocation2] sm:$0xff]
      %v477 = vld [vmem:[#allocation2 + $0x8] sm:$0xff]
      %v478 = vld [vmem:[#allocation2 + $0x10] sm:$0xff]
      %v479 = vld [vmem:[#allocation2 + $0x18] sm:$0xff]
      %v480 = vld [vmem:[#allocation2 + $0x20] sm:$0xff]
      %v481 = vld [vmem:[#allocation2 + $0x28] sm:$0xff]
      %v482 = vld [vmem:[#allocation2 + $0x30] sm:$0xff]
      %v483 = vld [vmem:[#allocation2 + $0x38] sm:$0xff]
      %v484 = vld [vmem:[#allocation2 + $0x40] sm:$0xff]
      %v485 = vld [vmem:[#allocation2 + $0x48] sm:$0xff]
      %v486 = vld [vmem:[#allocation2 + $0x50] sm:$0xff]
      %v487 = vld [vmem:[#allocation2 + $0x58] sm:$0xff]
      %v488 = vld [vmem:[#allocation2 + $0x60] sm:$0xff]
      %v489 = vld [vmem:[#allocation2 + $0x68] sm:$0xff]
      %v490 = vld [vmem:[#allocation2 + $0x70] sm:$0xff]
      %v491 = vld [vmem:[#allocation2 + $0x78] sm:$0xff]
      %v492 = vadd.f32 %v476, %v390
      %v493 = vadd.f32 %v477, %v393
      %v494 = vadd.f32 %v478, %v398
      %v495 = vadd.f32 %v479, %v401
      %v496 = vadd.f32 %v480, %v406
      %v497 = vadd.f32 %v481, %v409
      %v498 = vadd.f32 %v482, %v414
      %v499 = vadd.f32 %v483, %v417
      %v500 = vadd.f32 %v484, %v422
      %v501 = vadd.f32 %v485, %v425
      %v502 = vadd.f32 %v486, %v430
      %v503 = vadd.f32 %v487, %v433
      %v504 = vadd.f32 %v488, %v438
      %v505 = vadd.f32 %v489, %v441
      %v506 = vadd.f32 %v490, %v446
      %v507 = vadd.f32 %v491, %v449
      %508 = vst [vmem:[#allocation2] sm:$0xff] %v492
      %509 = vst [vmem:[#allocation2 + $0x8] sm:$0xff] %v493
      %510 = vst [vmem:[#allocation2 + $0x10] sm:$0xff] %v494
      %511 = vst [vmem:[#allocation2 + $0x18] sm:$0xff] %v495
      %512 = vst [vmem:[#allocation2 + $0x20] sm:$0xff] %v496
      %513 = vst [vmem:[#allocation2 + $0x28] sm:$0xff] %v497
      %514 = vst [vmem:[#allocation2 + $0x30] sm:$0xff] %v498
      %515 = vst [vmem:[#allocation2 + $0x38] sm:$0xff] %v499
      %516 = vst [vmem:[#allocation2 + $0x40] sm:$0xff] %v500
      %517 = vst [vmem:[#allocation2 + $0x48] sm:$0xff] %v501
      %518 = vst [vmem:[#allocation2 + $0x50] sm:$0xff] %v502
      %519 = vst [vmem:[#allocation2 + $0x58] sm:$0xff] %v503
      %520 = vst [vmem:[#allocation2 + $0x60] sm:$0xff] %v504
      %521 = vst [vmem:[#allocation2 + $0x68] sm:$0xff] %v505
      %522 = vst [vmem:[#allocation2 + $0x70] sm:$0xff] %v506
      %523 = vst [vmem:[#allocation2 + $0x78] sm:$0xff] %v507
    $region33: #{_ffn_padded_call.1} parent=1 // pred_fallthru
      _
    // Predicated region
    $region34: #{_ffn_padded_call.1} parent=1 // pred_check
      %p524 = pneg %p452
    $region35: #{_ffn_padded_call.1} parent=1 // pred_check_branch
      %526 = sbr.rel (%p524) target = $region37
    $region36: #{_ffn_padded_call.1} parent=1 // pred_region
      %v527 = vld [vmem:[#allocation2] sm:$0xff]
      %v528 = vld [vmem:[#allocation2 + $0x8] sm:$0xff]
      %v529 = vld [vmem:[#allocation2 + $0x10] sm:$0xff]
      %v530 = vld [vmem:[#allocation2 + $0x18] sm:$0xff]
      %v531 = vld [vmem:[#allocation2 + $0x20] sm:$0xff]
      %v532 = vld [vmem:[#allocation2 + $0x28] sm:$0xff]
      %v533 = vld [vmem:[#allocation2 + $0x30] sm:$0xff]
      %v534 = vld [vmem:[#allocation2 + $0x38] sm:$0xff]
      %v535 = vld [vmem:[#allocation2 + $0x40] sm:$0xff]
      %v536 = vld [vmem:[#allocation2 + $0x48] sm:$0xff]
      %v537 = vld [vmem:[#allocation2 + $0x50] sm:$0xff]
      %v538 = vld [vmem:[#allocation2 + $0x58] sm:$0xff]
      %v539 = vld [vmem:[#allocation2 + $0x60] sm:$0xff]
      %v540 = vld [vmem:[#allocation2 + $0x68] sm:$0xff]
      %v541 = vld [vmem:[#allocation2 + $0x70] sm:$0xff]
      %v542 = vld [vmem:[#allocation2 + $0x78] sm:$0xff]
      %v543 = vld [vmem:[%s4] sm:$0x1]
      %v545 = vlaneseq
      %v546 = vshrl.u32 %v545, 7
      %v547 = vsub.s32 0, %v546
      %v548 = vrot.slane %v543, %v547
      %v550 = vadd.f32 %v527, %v548
      %v551 = vadd.f32 %v528, %v548
      %v552 = vadd.f32 %v529, %v548
      %v553 = vadd.f32 %v530, %v548
      %v554 = vadd.f32 %v531, %v548
      %v555 = vadd.f32 %v532, %v548
      %v556 = vadd.f32 %v533, %v548
      %v557 = vadd.f32 %v534, %v548
      %v558 = vadd.f32 %v535, %v548
      %v559 = vadd.f32 %v536, %v548
      %v560 = vadd.f32 %v537, %v548
      %v561 = vadd.f32 %v538, %v548
      %v562 = vadd.f32 %v539, %v548
      %v563 = vadd.f32 %v540, %v548
      %v564 = vadd.f32 %v541, %v548
      %v565 = vadd.f32 %v542, %v548
      %566 = vst [vmem:[%s5] sm:$0xff] %v550
      %567 = vst [vmem:[%s5 + $0x8] sm:$0xff] %v551
      %568 = vst [vmem:[%s5 + $0x10] sm:$0xff] %v552
      %569 = vst [vmem:[%s5 + $0x18] sm:$0xff] %v553
      %570 = vst [vmem:[%s5 + $0x20] sm:$0xff] %v554
      %571 = vst [vmem:[%s5 + $0x28] sm:$0xff] %v555
      %572 = vst [vmem:[%s5 + $0x30] sm:$0xff] %v556
      %573 = vst [vmem:[%s5 + $0x38] sm:$0xff] %v557
      %574 = vst [vmem:[%s5 + $0x40] sm:$0xff] %v558
      %575 = vst [vmem:[%s5 + $0x48] sm:$0xff] %v559
      %576 = vst [vmem:[%s5 + $0x50] sm:$0xff] %v560
      %577 = vst [vmem:[%s5 + $0x58] sm:$0xff] %v561
      %578 = vst [vmem:[%s5 + $0x60] sm:$0xff] %v562
      %579 = vst [vmem:[%s5 + $0x68] sm:$0xff] %v563
      %580 = vst [vmem:[%s5 + $0x70] sm:$0xff] %v564
      %581 = vst [vmem:[%s5 + $0x78] sm:$0xff] %v565
    $region37: #{_ffn_padded_call.1} parent=1 // pred_fallthru
      _
    // Predicated region
    $region38: #{_ffn_padded_call.1} parent=1 // pred_check
      _
    $region39: #{_ffn_padded_call.1} parent=1 // pred_check_branch
      %583 = sbr.rel (0) target = $region41
    $region40: #{_ffn_padded_call.1} parent=1 // pred_region
      _
    $region41: #{_ffn_padded_call.1} parent=1 // pred_fallthru
      _
    // Predicated region
    $region42: #{_ffn_padded_call.1} parent=1 // pred_check
      _
    $region43: #{_ffn_padded_call.1} parent=1 // pred_check_branch
      %585 = sbr.rel (0) target = $region45
    $region44: #{_ffn_padded_call.1} parent=1 // pred_region
      _
    $region45: #{_ffn_padded_call.1} parent=1 // pred_fallthru
      _
    %586 = vsyncpa [#allocation4], 1

</llo_original>
